<compile_context>
chip_gen: v5e
topology: v5e:2x2
jax: 0.10.0
libtpu: 0.0.40
codegen_flags: <defaults>
</compile_context>

<pallas_src>
import functools

import jax
import jax.numpy as jnp
from jax.experimental import pallas as pl
from jax.experimental.pallas import tpu as pltpu


def _round_up(x, m):
    return (x + m - 1) // m * m


def _cdiv(a, b):
    return (a + b - 1) // b


def _ain_kernel(x_ref, g_ref, b_ref, o_ref, *, eps, negative_slope, inv_hw):
    # x_ref: (row_tile, HW); g_ref/b_ref: (row_tile, 1) f32; o_ref like x_ref.
    x = x_ref[...].astype(jnp.float32)
    g = g_ref[...]
    b = b_ref[...]

    # Two-pass statistics (whole row is resident in VMEM): exact biased
    # mean/var, no E[x^2] - mean^2 cancellation.
    mean = jnp.sum(x, axis=-1, keepdims=True) * inv_hw
    d = x - mean
    var = jnp.sum(d * d, axis=-1, keepdims=True) * inv_hw
    inv = jax.lax.rsqrt(var + eps)

    # Fold normalize + affine into a single FMA per element.
    scale = g * inv
    y = d * scale + b

    # leaky_relu; max-form saves a compare+select (valid for 0 <= slope <= 1).
    if 0.0 <= negative_slope <= 1.0:
        y = jnp.maximum(y, y * negative_slope)
    else:
        y = jnp.where(y >= 0, y, y * negative_slope)

    o_ref[...] = y.astype(o_ref.dtype)


def ain_forward(x, weight, bias, *, eps=1e-5, activation_param=0.01):
    """AIN forward: instance_norm (training-mode stats) + leaky_relu.

    x: (N, C, H, W), weight/bias: (C,).
    Matches PyTorch `functional.instance_norm` followed by leaky_relu; the
    running_mean/running_var buffer updates (training side effect) are not
    reproduced since they do not change the returned tensor.
    """
    N, C, H, W = x.shape
    NC, HW = N * C, H * W
    itemsize = jnp.dtype(x.dtype).itemsize

    # Sublane packing for the second-to-last block dim.
    sub = 8 if itemsize >= 4 else (16 if itemsize == 2 else 32)
    nc_rows_cap = _round_up(NC, sub)

    # Row tile: target ~2 MiB input blocks, but keep >= 4 grid blocks when NC
    # allows so BlockSpec double-buffering overlaps DMA with compute and the
    # "parallel" axis can be sharded over v7x's 2 TensorCores.
    row_bytes = HW * itemsize
    target_block_bytes = 2 * 1024 * 1024
    row_tile = max(sub, (target_block_bytes // max(row_bytes, 1)) // sub * sub)
    row_tile = min(row_tile, max(sub, _round_up(_cdiv(NC, 4), sub)))
    row_tile = min(row_tile, nc_rows_cap)

    # VMEM budget: clamp to a fraction of the physical VMEM of this chip
    # (64 MiB per TC on v7x, 128 MiB on v5e/v6e).
    try:
        phys_vmem = int(pltpu.get_tpu_info().vmem_capacity_bytes)
    except Exception:  # pragma: no cover - conservative fallback
        phys_vmem = 64 << 20
    budget = int(0.75 * phys_vmem)

    def _vmem_need(rt):
        blk = rt * HW * itemsize          # one in / out block
        f32_blk = rt * HW * 4             # f32 intermediates (x, d, y)
        par = 2 * _round_up(rt, 8) * 128 * 4  # lane-padded gamma/beta tiles (x2 buf)
        return 4 * blk + 3 * f32_blk + 2 * par + (4 << 20)

    # Shrink the tile if the footprint would not fit (e.g. very large H*W).
    while row_tile > sub and _vmem_need(row_tile) > budget:
        row_tile = max(sub, _round_up(row_tile // 2, sub))
    # TODO(synk): if even row_tile == sub exceeds the VMEM budget (H*W in the
    # multi-million range), the spatial axis should be split over a second
    # ("arbitrary") grid axis with sum / sum-of-squares accumulators.

    num_blocks = _cdiv(NC, row_tile)
    vmem_limit = int(min(max(_vmem_need(row_tile), 32 << 20), budget))

    # Flatten to (NC, HW) — no padding, no extra HBM passes.
    x2 = x.reshape(NC, HW)

    # Per-row affine params in f32 (tiny next to x traffic).
    gamma_rows = jnp.tile(weight.astype(jnp.float32), (N,)).reshape(NC, 1)
    beta_rows = jnp.tile(bias.astype(jnp.float32), (N,)).reshape(NC, 1)

    kernel = functools.partial(
        _ain_kernel,
        eps=float(eps),
        negative_slope=float(activation_param),
        inv_hw=1.0 / float(HW),
    )

    param_spec = pl.BlockSpec((row_tile, 1), lambda i: (i, 0))

    out2 = pl.pallas_call(
        kernel,
        out_shape=jax.ShapeDtypeStruct((NC, HW), x.dtype),
        grid_spec=pltpu.PrefetchScalarGridSpec(
            num_scalar_prefetch=0,
            grid=(num_blocks,),
            in_specs=[
                pl.BlockSpec((row_tile, HW), lambda i: (i, 0)),
                param_spec,
                param_spec,
            ],
            out_specs=pl.BlockSpec((row_tile, HW), lambda i: (i, 0)),
        ),
        compiler_params=pltpu.CompilerParams(
            dimension_semantics=("parallel",),
            vmem_limit_bytes=vmem_limit,
        ),
    )(x2, gamma_rows, beta_rows)

    return out2.reshape(N, C, H, W)


def _reference(x, weight, bias, eps=1e-5, negative_slope=0.01):
    mean = jnp.mean(x, axis=(2, 3), keepdims=True)
    var = jnp.mean(jnp.square(x - mean), axis=(2, 3), keepdims=True)
    y = (x - mean) / jnp.sqrt(var + eps)
    y = y * weight[None, :, None, None] + bias[None, :, None, None]
    return jnp.where(y >= 0, y, y * negative_slope)


if __name__ == "__main__":
    key = jax.random.PRNGKey(0)
    kx, kw, kb, kx2, kw2, kb2 = jax.random.split(key, 6)

    # Case 1: lane-aligned spatial dims (H*W = 256).
    N, C, H, W = 2, 4, 16, 16
    x = jax.random.normal(kx, (N, C, H, W), dtype=jnp.float32)
    weight = 1.0 + 0.1 * jax.random.normal(kw, (C,), dtype=jnp.float32)
    bias = 0.1 * jax.random.normal(kb, (C,), dtype=jnp.float32)

    out = jax.block_until_ready(ain_forward(x, weight, bias,
                                            eps=1e-5, activation_param=0.01))
    ref = _reference(x, weight, bias)
    assert out.shape == (N, C, H, W)
    assert jnp.allclose(out, ref, atol=2e-5, rtol=2e-5)

    # Case 2: ragged shapes — H*W=100 (not a multiple of 128) and NC=6 (not a
    # multiple of the row tile). Exercises the unpadded / masked-store path.
    N2, C2, H2, W2 = 2, 3, 10, 10
    x_b = jax.random.normal(kx2, (N2, C2, H2, W2), dtype=jnp.float32)
    w_b = 1.0 + 0.1 * jax.random.normal(kw2, (C2,), dtype=jnp.float32)
    b_b = 0.1 * jax.random.normal(kb2, (C2,), dtype=jnp.float32)

    out_b = jax.block_until_ready(ain_forward(x_b, w_b, b_b))
    ref_b = _reference(x_b, w_b, b_b)
    assert out_b.shape == (N2, C2, H2, W2)
    assert jnp.allclose(out_b, ref_b, atol=2e-5, rtol=2e-5)

    # TODO(synk): running_mean/running_var buffer updates (training-time side
    # effect) and the distributed `group` argument are not reproduced; neither
    # affects the forward output.
    print("KERNEL_OK")
</pallas_src>

<mosaic_0001>
module attributes {stable_mosaic.version = 11 : i64} {
  func.func @_ain_kernel(%arg0: i32, %arg1: memref<8x256xf32, #tpu.memory_space<vmem>>, %arg2: memref<8x1xf32, #tpu.memory_space<vmem>>, %arg3: memref<8x1xf32, #tpu.memory_space<vmem>>, %arg4: memref<8x256xf32, #tpu.memory_space<vmem>>) attributes {dimension_semantics = [#tpu.dimension_semantics<parallel>], iteration_bounds = array<i64: 1>, scalar_prefetch = 0 : i64, scratch_operands = 0 : i64, tpu.core_type = #tpu.core_type<tc>, window_params = [{transform_indices = @transform_0, window_bounds = array<i64: 8, 256>}, {transform_indices = @transform_1, window_bounds = array<i64: 8, 1>}, {transform_indices = @transform_2, window_bounds = array<i64: 8, 1>}, {transform_indices = @transform_3, window_bounds = array<i64: 8, 256>}]} {
    %c0 = arith.constant 0 : index
    %c0_0 = arith.constant 0 : index
    %0 = vector.load %arg1[%c0, %c0_0] : memref<8x256xf32, #tpu.memory_space<vmem>>, vector<8x256xf32>
    %c0_1 = arith.constant 0 : index
    %c0_2 = arith.constant 0 : index
    %1 = vector.load %arg2[%c0_1, %c0_2] : memref<8x1xf32, #tpu.memory_space<vmem>>, vector<8x1xf32>
    %c0_3 = arith.constant 0 : index
    %c0_4 = arith.constant 0 : index
    %2 = vector.load %arg3[%c0_3, %c0_4] : memref<8x1xf32, #tpu.memory_space<vmem>>, vector<8x1xf32>
    %cst = arith.constant dense<0.000000e+00> : vector<8xf32>
    %3 = vector.multi_reduction <add>, %0, %cst [1] : vector<8x256xf32> to vector<8xf32>
    %4 = vector.shape_cast %3 : vector<8xf32> to vector<8x1xf32>
    %cst_5 = arith.constant 3.906250e-03 : f32
    %5 = vector.broadcast %cst_5 : f32 to vector<8x1xf32>
    %6 = arith.mulf %4, %5 : vector<8x1xf32>
    %7 = vector.broadcast %6 : vector<8x1xf32> to vector<8x256xf32>
    %8 = arith.subf %0, %7 : vector<8x256xf32>
    %9 = arith.mulf %8, %8 : vector<8x256xf32>
    %cst_6 = arith.constant dense<0.000000e+00> : vector<8xf32>
    %10 = vector.multi_reduction <add>, %9, %cst_6 [1] : vector<8x256xf32> to vector<8xf32>
    %11 = vector.shape_cast %10 : vector<8xf32> to vector<8x1xf32>
    %cst_7 = arith.constant 3.906250e-03 : f32
    %12 = vector.broadcast %cst_7 : f32 to vector<8x1xf32>
    %13 = arith.mulf %11, %12 : vector<8x1xf32>
    %cst_8 = arith.constant 9.99999974E-6 : f32
    %14 = vector.broadcast %cst_8 : f32 to vector<8x1xf32>
    %15 = arith.addf %13, %14 : vector<8x1xf32>
    %16 = math.rsqrt %15 : vector<8x1xf32>
    %17 = arith.mulf %1, %16 : vector<8x1xf32>
    %18 = vector.broadcast %17 : vector<8x1xf32> to vector<8x256xf32>
    %19 = arith.mulf %8, %18 : vector<8x256xf32>
    %20 = vector.broadcast %2 : vector<8x1xf32> to vector<8x256xf32>
    %21 = arith.addf %19, %20 : vector<8x256xf32>
    %cst_9 = arith.constant 0.00999999977 : f32
    %22 = vector.broadcast %cst_9 : f32 to vector<8x256xf32>
    %23 = arith.mulf %21, %22 : vector<8x256xf32>
    %24 = arith.maximumf %21, %23 : vector<8x256xf32>
    %c0_10 = arith.constant 0 : index
    %c0_11 = arith.constant 0 : index
    %25 = vector.load %arg4[%c0_10, %c0_11] : memref<8x256xf32, #tpu.memory_space<vmem>>, vector<8x256xf32>
    tpu.vector_store %arg4[%c0_10, %c0_11], %24 {strides = array<i32>} : memref<8x256xf32, #tpu.memory_space<vmem>>, vector<8x256xf32>,
    return
  }
  func.func @transform_0(%arg0: i32) -> (i32, i32) {
    %c0_i32 = arith.constant 0 : i32
    %c0_i32_0 = arith.constant 0 : i32
    return %arg0, %c0_i32 : i32, i32
  }
  func.func @transform_1(%arg0: i32) -> (i32, i32) {
    %c0_i32 = arith.constant 0 : i32
    %c0_i32_0 = arith.constant 0 : i32
    return %arg0, %c0_i32 : i32, i32
  }
  func.func @transform_2(%arg0: i32) -> (i32, i32) {
    %c0_i32 = arith.constant 0 : i32
    %c0_i32_0 = arith.constant 0 : i32
    return %arg0, %c0_i32 : i32, i32
  }
  func.func @transform_3(%arg0: i32) -> (i32, i32) {
    %c0_i32 = arith.constant 0 : i32
    %c0_i32_0 = arith.constant 0 : i32
    return %arg0, %c0_i32 : i32, i32
  }
}

</mosaic_0001>

<llo_original>
// kernel: tpu_custom_call.1
$region0: #{tpu_custom_call.1}
  #allocation0 [shape = 'u32[]', space=smem, size = 0x4, offset = 0x4, fixed_abs, tag = 'smem constant byte address 0x4 - core index']
  #allocation1 [shape = 'u32[72,128]{1,0:T(1,128)}', space=vmem, size = 0x9000, scoped, tag = 'internal scratch']
  %s0 = inlined_call_operand.vmem [shape: f32[8,256], index: 0, kind: input, shape index: {}]
  %s1 = inlined_call_operand.vmem [shape: f32[8,1], index: 1, kind: input, shape index: {}]
  %s2 = inlined_call_operand.vmem [shape: f32[8,1], index: 2, kind: input, shape index: {}]
  %s3 = inlined_call_operand.hbm [shape: f32[8,256], index: 3, kind: output, shape index: {}]
  %s4 = sld [smem:[#allocation0]]
  $region22: #{tpu_custom_call.1} parent=0
    _
  %s6 = ssub.s32 1, %s4
  %s7 = scalar_select 0, %s6, %s4
  $region1: #{tpu_custom_call.1} parent=0
    #allocation2 [shape = 'u8[8192]{0}', space=vmem, size = 0x2000, scoped, tag = 'output window, operand 0, single buffered']
    #allocation3 [shape = 's32[1]{0}', space=sflag, size = 0x4, scoped, tag = 'scoped memory for tpu_custom_call.1']
    %8 = vsyncpa [#allocation3], 0
    // Predicated region
    $region2: #{tpu_custom_call.1} parent=1 // pred_check
      _
    $region3: #{tpu_custom_call.1} parent=1 // pred_check_branch
      %10 = sbr.rel (0) target = $region5
    $region4: #{tpu_custom_call.1} parent=1 // pred_region
      _
    $region5: #{tpu_custom_call.1} parent=1 // pred_fallthru
      _
    // Predicated region
    $region6: #{tpu_custom_call.1} parent=1 // pred_check
      _
    $region7: #{tpu_custom_call.1} parent=1 // pred_check_branch
      %12 = sbr.rel (0) target = $region9
    $region8: #{tpu_custom_call.1} parent=1 // pred_region
      _
    $region9: #{tpu_custom_call.1} parent=1 // pred_fallthru
      _
    // Predicated region
    $region10: #{tpu_custom_call.1} parent=1 // pred_check
      _
    $region11: #{tpu_custom_call.1} parent=1 // pred_check_branch
      %14 = sbr.rel (0) target = $region13
    $region12: #{tpu_custom_call.1} parent=1 // pred_region
      _
    $region13: #{tpu_custom_call.1} parent=1 // pred_fallthru
      _
    %v15 = vld [vmem:[%s0] sm:$0xff]
    %v16 = vld [vmem:[%s0 + $0x8] sm:$0xff]
    %v17 = vld [vmem:[%s1] sm:$0xff]
    %v18 = vld [vmem:[%s2] sm:$0xff]
    %v19 = vadd.f32 %v15, %v16
    %20 = vadd.xlane.f32.xlu0 %v19
    %v21 = vpop.xlane.xlu0 %20
    %v22 = vmul.f32 %v21, 0.00390625
    %v23 = vsub.f32 %v15, %v22
    %v24 = vsub.f32 %v16, %v22
    %v25 = vmul.f32 %v23, %v23
    %v26 = vmul.f32 %v24, %v24
    %v27 = vadd.f32 %v25, %v26
    %28 = vadd.xlane.f32.xlu0 %v27
    %v29 = vpop.xlane.xlu0 %28
    %v30 = vmul.f32 %v29, 0.00390625
    %v31 = vadd.f32 %v30, 1e-05
    %v32 = vrsqrt.pop %v31
    %v33 = vmul.f32 %v32, %v31
    %v34 = vmul.f32 %v33, %v32
    %v35 = vmul.f32 0.5, %v34
    %v36 = vsub.f32 1.5, %v35
    %v37 = vmul.f32 %v32, %v36
    %vm38 = vweird.f32 %v31
    %vm39 = vweird.f32 %v32
    %vm40 = vmor %vm38, %vm39
    %v41 = vsel %vm40, %v32, %v37
    %v42 = vmul.f32 %v17, %v41
    %44 = vset.pattern.permute.xlu0 0
    %45 = vperm.xlu0 %44, %v42
    %v46 = vpop.permute.xlu0 %45
    %v48 = vmul.f32 %v23, %v46
    %v49 = vmul.f32 %v24, %v46
    %51 = vset.pattern.permute.xlu0 0
    %52 = vperm.xlu0 %51, %v18
    %v53 = vpop.permute.xlu0 %52
    %v55 = vadd.f32 %v48, %v53
    %v56 = vadd.f32 %v49, %v53
    %v57 = vmul.f32 %v55, 0.01
    %v58 = vmul.f32 %v56, 0.01
    %v59 = vmax.f32 %v55, %v57
    %v60 = vmax.f32 %v56, %v58
    %61 = vst [vmem:[#allocation2] sm:$0xff] %v59
    %62 = vst [vmem:[#allocation2 + $0x8] sm:$0xff] %v60
    // Predicated region
    $region14: #{tpu_custom_call.1} parent=1 // pred_check
      _
    $region15: #{tpu_custom_call.1} parent=1 // pred_check_branch
      %64 = sbr.rel (0) target = $region17
    $region16: #{tpu_custom_call.1} parent=1 // pred_region
      %66 = vsyncadd [#allocation3], 0
      %s68 = sshll.u32 [#allocation2], 4
      %s69 = int_to_ptr.vmem [resolvable:$true] %s68
      %s70 = sshll.u32 %s3, 4
      %s71 = int_to_ptr.hbm [resolvable:$true] %s70
      %73 = dma.vmem_to_hbm [thread:$0]  %s69, 256, %s71, [#allocation3]
    $region17: #{tpu_custom_call.1} parent=1 // pred_fallthru
      _
    // Predicated region
    $region18: #{tpu_custom_call.1} parent=1 // pred_check
      _
    $region19: #{tpu_custom_call.1} parent=1 // pred_check_branch
      %75 = sbr.rel (0) target = $region21
    $region20: #{tpu_custom_call.1} parent=1 // pred_region
      %77 = dma.done [#allocation3], 256
    $region21: #{tpu_custom_call.1} parent=1 // pred_fallthru
      _
    %78 = vsyncpa [#allocation3], 1

</llo_original>
